<compile_context>
chip_gen: v6e
topology: v6e:2x2x1
jax: 0.10.0
libtpu: 0.0.40
codegen_flags: <defaults>
</compile_context>

<pallas_src>
import functools

import numpy as np
import jax
import jax.numpy as jnp
from jax import lax
from jax.experimental import pallas as pl
from jax.experimental.pallas import tpu as pltpu

NEG_INF = float("-inf")   # Python float: jaxpr literal, never a captured jax.Array


def _mention_band_loss_kernel(x_ref, w_ref, b_ref, mask_ref, gold_ref,
                              band_ref, part_ref, *, max_mention_length):
    # x_ref:    (Bt, S_pad, H)     bf16 activations
    # w_ref:    (8, H)             bf16; rows 0..2 = [start, end, mention] head weights
    # b_ref:    (8, 1)             f32 matching bias column
    # mask_ref: (Bt, 1, S_pad)     f32 {0,1} input mask
    # gold_ref: (Bt, L_pad, S_pad) f32 gold labels in band layout
    # band_ref: (Bt, L_pad, S_pad) f32 out; [b, l, j] = score of inclusive span (j-l, j)
    # part_ref: (1, 1, 128)        f32 out; lane 0 = sum of BCE terms, lane 1 = valid count
    Bt, L_pad, S = band_ref.shape
    L = max_mention_length

    lane = lax.broadcasted_iota(jnp.int32, (1, S), 1)          # end position j
    row_idx = lax.broadcasted_iota(jnp.int32, (L_pad, S), 0)   # span length - 1 (l)
    col_idx = lax.broadcasted_iota(jnp.int32, (L_pad, S), 1)

    total = jnp.zeros((1, 1), jnp.float32)
    count = jnp.zeros((1, 1), jnp.float32)

    for bi in range(Bt):                                       # small, fully unrolled
        x = x_ref[bi]                                          # (S, H) bf16
        valid_tok = mask_ref[bi] > 0.0                         # (1, S) bool

        # (8, S) = W (8,H) @ x^T; rhs-transposed MXU matmul (same pattern as q@k^T in
        # flash attention -> no vxpose of the big activation tile), bf16 in, f32 acc.
        logits = lax.dot_general(
            w_ref[...], x,
            dimension_numbers=(((1,), (1,)), ((), ())),
            preferred_element_type=jnp.float32) + b_ref[...]   # (8, S) f32

        start_row = jnp.where(valid_tok, logits[0:1, :], NEG_INF)   # (1, S)
        end_row = jnp.where(valid_tok, logits[1:2, :], NEG_INF)     # (1, S)
        # Mention logprob only appears inside the in-span cumulative sum; masking it
        # to 0 matches the torch reference for contiguous trailing padding and avoids
        # -inf - (-inf) NaNs.
        ment_row = jnp.where(valid_tok, logits[2:3, :], 0.0)        # (1, S)

        # band row l: score(i=j-l, j) = start[j-l] + end[j] + sum_{t=j-l..j} mention[t]
        rows = []
        span_sum = ment_row          # running window sum, extended one token per row
        start_shift = start_row      # start[j-l]
        for l in range(L_pad):
            if l < L:
                if l > 0:
                    start_shift = pltpu.roll(start_row, shift=l, axis=1)
                    span_sum = span_sum + pltpu.roll(ment_row, shift=l, axis=1)
                row = start_shift + span_sum + end_row
                valid = (lane >= l) & valid_tok        # span fits & end token unmasked
                rows.append(jnp.where(valid, row, NEG_INF))
            else:                                      # sublane padding rows
                rows.append(jnp.full((1, S), NEG_INF, jnp.float32))
        band = jnp.concatenate(rows, axis=0)           # (L_pad, S)
        band_ref[bi] = band                            # single unmasked full-tile store

        # Fused masked BCE-with-logits partial reduction.  Validity is structural
        # (not `x != -inf`), so NaNs upstream cannot silently enter the mean.
        span_valid = (col_idx >= row_idx) & (row_idx < L) & valid_tok   # (L_pad, S)
        y = gold_ref[bi]                                                # (L_pad, S)
        xs = jnp.where(span_valid, band, 0.0)
        per = jnp.maximum(xs, 0.0) - xs * y + jnp.log1p(jnp.exp(-jnp.abs(xs)))
        per = jnp.where(span_valid, per, 0.0)
        total = total + jnp.sum(jnp.sum(per, axis=1, keepdims=True),
                                axis=0, keepdims=True)
        count = count + jnp.sum(jnp.sum(span_valid.astype(jnp.float32),
                                        axis=1, keepdims=True),
                                axis=0, keepdims=True)

    out_lane = lax.broadcasted_iota(jnp.int32, (1, 128), 1)
    part_ref[0] = (jnp.where(out_lane == 0, total, 0.0)
                   + jnp.where(out_lane == 1, count, 0.0))


def mention_band_and_loss_pallas(bert_output, input_mask, w, b, gold_band,
                                 max_mention_length, rows_per_block=None):
    """Band mention scores (B, L_pad, S_pad) + fused masked-BCE mean loss."""
    B, S, H = bert_output.shape
    L = int(max_mention_length)
    L_pad = ((L + 7) // 8) * 8                  # full sublane tiles -> unmasked stores
    S_pad = ((S + 127) // 128) * 128            # lane-dense output / well-formed rolls

    x = bert_output.astype(jnp.bfloat16)        # stream activations in bf16 (HBM-bound)
    mask_f = input_mask.astype(jnp.float32)
    gold_band = gold_band.astype(jnp.float32)

    # Rows per grid step from a conservative VMEM budget (v5e default scoped 16 MiB,
    # v7x physical 64 MiB); keep >= 2 grid steps so both v7x TensorCores get work.
    # TODO(synk): for very large single rows (S_pad*H beyond the budget) tile S with
    # an (L-1)-token halo instead of whole-row blocks.
    bytes_per_row = (S_pad * H * 2                 # bf16 activations
                     + 2 * L_pad * S_pad * 4       # band out + gold labels (f32)
                     + S_pad * 4)                  # mask row
    if rows_per_block is None:
        budget = 12 * 1024 * 1024                  # per-buffer; ~2x w/ double buffering
        rows_per_block = max(1, min(budget // bytes_per_row, -(-B // 2)))
    Bt = int(rows_per_block)
    B_pad = -(-B // Bt) * Bt
    n_blocks = B_pad // Bt

    x = jnp.pad(x, ((0, B_pad - B), (0, S_pad - S), (0, 0)))
    mask_f = jnp.pad(mask_f, ((0, B_pad - B), (0, S_pad - S))).reshape(B_pad, 1, S_pad)
    gold_band = jnp.pad(gold_band, ((0, B_pad - B),
                                    (0, L_pad - gold_band.shape[1]),
                                    (0, S_pad - gold_band.shape[2])))

    # pad the 3-row head to 8 sublanes (zero rows are unused); weights in bf16 to
    # match the MXU input dtype of the activations.
    w8 = jnp.zeros((8, H), jnp.float32).at[0:3, :].set(
        w.astype(jnp.float32)).astype(jnp.bfloat16)
    b8 = jnp.zeros((8, 1), jnp.float32).at[0:3, 0].set(b.astype(jnp.float32))

    kernel = functools.partial(_mention_band_loss_kernel, max_mention_length=L)
    band, partials = pl.pallas_call(
        kernel,
        out_shape=(jax.ShapeDtypeStruct((B_pad, L_pad, S_pad), jnp.float32),
                   jax.ShapeDtypeStruct((n_blocks, 1, 128), jnp.float32)),
        grid=(n_blocks,),
        in_specs=[
            pl.BlockSpec((Bt, S_pad, H), lambda i: (i, 0, 0)),      # activations (bf16)
            pl.BlockSpec((8, H), lambda i: (0, 0)),                 # head weights
            pl.BlockSpec((8, 1), lambda i: (0, 0)),                 # head bias column
            pl.BlockSpec((Bt, 1, S_pad), lambda i: (i, 0, 0)),      # input mask rows
            pl.BlockSpec((Bt, L_pad, S_pad), lambda i: (i, 0, 0)),  # gold band labels
        ],
        out_specs=(
            pl.BlockSpec((Bt, L_pad, S_pad), lambda i: (i, 0, 0)),  # band scores
            pl.BlockSpec((1, 1, 128), lambda i: (i, 0, 0)),         # (total, count)
        ),
        compiler_params=pltpu.CompilerParams(
            dimension_semantics=("parallel",),       # batch blocks independent (v7x)
            vmem_limit_bytes=32 * 1024 * 1024),
    )(x, w8, b8, mask_f, gold_band)

    total = jnp.sum(partials[:, 0, 0])
    count = jnp.sum(partials[:, 0, 1])
    # Matches torch BCEWithLogitsLoss(reduction='mean') over finite logits; NaN if
    # every span is masked, same as the torch reference.
    loss = total / count
    return band[:B], loss


def mention_dect_forward(params, input_ids, input_mask, gold_mention_bounds,
                         gold_mention_bounds_mask, max_mention_length=4):
    # TODO(synk): the pretrained BERT encoder (ques_encoder) has no clean Pallas
    # equivalent here; it is replaced by a deterministic embedding-lookup surrogate
    # that produces bert_output with the shape the head expects.
    bert_output = jnp.tanh(params["embed"][input_ids])        # (B, S, H)
    B, S, H = bert_output.shape
    L = int(max_mention_length)

    # Gold binary labels in band layout: 1 at [b, j-i, j] for gold inclusive span (i, j).
    gold = jnp.asarray(gold_mention_bounds, jnp.int32)
    gold = gold.at[:, :, 1].add(-1)                           # exclusive -> inclusive end
    gmask = jnp.asarray(gold_mention_bounds_mask).astype(bool)
    gold = jnp.where(gmask[:, :, None], gold, -1)             # masked mentions -> (-1,-1)
    i_g, j_g = gold[:, :, 0], gold[:, :, 1]
    l_g = j_g - i_g
    ok = gmask & (i_g >= 0) & (l_g >= 0) & (l_g < L) & (j_g < S)
    flat = jnp.where(ok, l_g * S + j_g, L * S)                # invalid -> dummy slot
    gold_band = jnp.zeros((B, L * S + 1), jnp.float32)
    gold_band = gold_band.at[jnp.arange(B)[:, None], flat].set(1.0)
    gold_band = gold_band[:, :L * S].reshape(B, L, S)

    band, loss = mention_band_and_loss_pallas(
        bert_output, input_mask, params["w"], params["b"], gold_band, L)
    L_pad, S_pad = band.shape[1], band.shape[2]

    # torch flatten-then-filter_by_mention_size ordering (keeps spans with size <= L,
    # *including* non-positive spans, which are -inf) as a static gather from the band.
    ar = np.arange(S)
    bounds = np.stack([np.broadcast_to(ar[:, None], (S, S)),
                       np.broadcast_to(ar[None, :], (S, S))], axis=-1).reshape(-1, 2)
    keep = np.nonzero(bounds[:, 1] - bounds[:, 0] + 1 <= L)[0]
    bounds_f = bounds[keep].astype(np.int32)                  # (K, 2)
    span_off = bounds_f[:, 1] - bounds_f[:, 0]                # j - i, may be < 0
    in_band = span_off >= 0
    flat_idx = np.where(in_band, span_off * S_pad + bounds_f[:, 1], 0).astype(np.int32)
    gathered = band.reshape(B, L_pad * S_pad)[:, jnp.asarray(flat_idx)]        # (B, K)
    mention_logits = jnp.where(jnp.asarray(in_band)[None, :], gathered, NEG_INF)
    bounds_j = jnp.asarray(bounds_f, jnp.int32)
    mention_bounds = jnp.broadcast_to(bounds_j[None], (B, keep.size, 2))

    return loss, mention_logits, mention_bounds


def _reference_forward(params, input_ids, input_mask, gold_mention_bounds,
                       gold_mention_bounds_mask, max_mention_length=4):
    """Pure-JAX port of the torch code path, for sanity checking the kernel."""
    bert_output = jnp.tanh(params["embed"][input_ids])
    # mirror the kernel's bf16 MXU input precision (products exact, f32 accumulate)
    x = bert_output.astype(jnp.bfloat16).astype(jnp.float32)
    wq = params["w"].astype(jnp.bfloat16).astype(jnp.float32)
    B, S, H = x.shape
    logits = jnp.sum(x[:, :, None, :] * wq[None, None, :, :], axis=-1) + params["b"]
    start, end, ment = logits[..., 0], logits[..., 1], logits[..., 2]
    m = input_mask.astype(bool)
    start = jnp.where(m, start, NEG_INF)
    end = jnp.where(m, end, NEG_INF)
    ment = jnp.where(m, ment, NEG_INF)
    ms = start[:, :, None] + end[:, None, :]
    cum_end = jnp.cumsum(ment, axis=1)
    prefix = jnp.concatenate([jnp.zeros((B, 1), ment.dtype),
                              jnp.cumsum(ment[:, :-1], axis=1)], axis=1)
    ms = ms + cum_end[:, None, :] - prefix[:, :, None]
    ii = jnp.arange(S)[:, None]
    jj = jnp.arange(S)[None, :]
    valid = (jj >= ii)[None] & m[:, None, :]
    ms = jnp.where(valid, ms, NEG_INF).reshape(B, S * S)

    ar = np.arange(S)
    bounds = np.stack([np.broadcast_to(ar[:, None], (S, S)),
                       np.broadcast_to(ar[None, :], (S, S))], axis=-1).reshape(-1, 2)
    keep = np.nonzero(bounds[:, 1] - bounds[:, 0] + 1 <= max_mention_length)[0]
    bounds_f = jnp.asarray(bounds[keep], jnp.int32)
    ms = ms[:, keep]

    gold = jnp.asarray(gold_mention_bounds, jnp.int32)
    gold = gold.at[:, :, 1].add(-1)
    gmask = jnp.asarray(gold_mention_bounds_mask).astype(bool)
    gold = jnp.where(gmask[:, :, None], gold, -1)
    eq = jnp.all(bounds_f[None, :, None, :] == gold[:, None, :, :], axis=-1)
    y = jnp.any(eq, axis=-1).astype(jnp.float32)

    v = ms != NEG_INF
    xs = jnp.where(v, ms, 0.0)
    per = jnp.maximum(xs, 0.0) - xs * y + jnp.log1p(jnp.exp(-jnp.abs(xs)))
    loss = jnp.sum(jnp.where(v, per, 0.0)) / jnp.sum(v.astype(jnp.float32))
    return loss, ms


if __name__ == "__main__":
    key = jax.random.PRNGKey(0)
    B, S, H, V = 2, 8, 32, 50
    MAX_MENTION_LEN = 4
    k_emb, k_w, k_b, k_ids = jax.random.split(key, 4)
    params = {
        "embed": 0.5 * jax.random.normal(k_emb, (V, H), jnp.float32),
        "w": 0.1 * jax.random.normal(k_w, (3, H), jnp.float32),
        "b": 0.1 * jax.random.normal(k_b, (3,), jnp.float32),
    }
    input_ids = jax.random.randint(k_ids, (B, S), 0, V)
    input_mask = jnp.array([[1, 1, 1, 1, 1, 1, 1, 1],
                            [1, 1, 1, 1, 1, 1, 0, 0]], dtype=jnp.int32)
    # gold bounds use the torch convention (end exclusive; forward subtracts 1)
    gold_mention_bounds = jnp.array([[[1, 3], [4, 6]],
                                     [[2, 4], [0, 0]]], dtype=jnp.int32)
    gold_mention_bounds_mask = jnp.array([[1, 1], [1, 0]], dtype=jnp.int32)

    loss, mention_logits, mention_bounds = mention_dect_forward(
        params, input_ids, input_mask, gold_mention_bounds,
        gold_mention_bounds_mask, MAX_MENTION_LEN)
    jax.block_until_ready((loss, mention_logits, mention_bounds))

    # sanity check against the pure-JAX (torch-order) reference
    ref_loss, ref_logits = _reference_forward(
        params, input_ids, input_mask, gold_mention_bounds,
        gold_mention_bounds_mask, MAX_MENTION_LEN)
    assert bool(jnp.allclose(mention_logits, ref_logits, rtol=2e-3, atol=2e-3)), \
        "mention score kernel mismatch"
    assert bool(jnp.allclose(loss, ref_loss, rtol=2e-3, atol=2e-3)), "loss kernel mismatch"
    assert bool(jnp.isfinite(loss))

    print("KERNEL_OK")
</pallas_src>

<mosaic_0001>
module attributes {stable_mosaic.version = 11 : i64} {
  func.func @_mention_band_loss_kernel(%arg0: i32, %arg1: memref<1x128x32xbf16, #tpu.memory_space<vmem>>, %arg2: memref<8x32xbf16, #tpu.memory_space<vmem>>, %arg3: memref<8x1xf32, #tpu.memory_space<vmem>>, %arg4: memref<1x1x128xf32, #tpu.memory_space<vmem>>, %arg5: memref<1x8x128xf32, #tpu.memory_space<vmem>>, %arg6: memref<1x8x128xf32, #tpu.memory_space<vmem>>, %arg7: memref<1x1x128xf32, #tpu.memory_space<vmem>>) attributes {dimension_semantics = [#tpu.dimension_semantics<parallel>], iteration_bounds = array<i64: 2>, scalar_prefetch = 0 : i64, scratch_operands = 0 : i64, tpu.core_type = #tpu.core_type<tc>, window_params = [{transform_indices = @transform_0, window_bounds = array<i64: 1, 128, 32>}, {pipeline_mode = #tpu.pipeline_mode<synchronous>, transform_indices = @transform_1, window_bounds = array<i64: 8, 32>}, {pipeline_mode = #tpu.pipeline_mode<synchronous>, transform_indices = @transform_2, window_bounds = array<i64: 8, 1>}, {transform_indices = @transform_3, window_bounds = array<i64: 1, 1, 128>}, {transform_indices = @transform_4, window_bounds = array<i64: 1, 8, 128>}, {transform_indices = @transform_5, window_bounds = array<i64: 1, 8, 128>}, {transform_indices = @transform_6, window_bounds = array<i64: 1, 1, 128>}]} {
    %0 = tpu.iota {dimensions = array<i32: 1>} : vector<1x128xi32>
    %1 = tpu.iota {dimensions = array<i32: 0>} : vector<8x128xi32>
    %2 = tpu.iota {dimensions = array<i32: 1>} : vector<8x128xi32>
    %cst = arith.constant 0.000000e+00 : f32
    %3 = vector.broadcast %cst : f32 to vector<1x1xf32>
    %cst_0 = arith.constant 0.000000e+00 : f32
    %4 = vector.broadcast %cst_0 : f32 to vector<1x1xf32>
    %c0 = arith.constant 0 : index
    %c0_1 = arith.constant 0 : index
    %c0_2 = arith.constant 0 : index
    %5 = vector.load %arg1[%c0, %c0_1, %c0_2] : memref<1x128x32xbf16, #tpu.memory_space<vmem>>, vector<1x128x32xbf16>
    %6 = vector.shape_cast %5 : vector<1x128x32xbf16> to vector<128x32xbf16>
    %c0_3 = arith.constant 0 : index
    %c0_4 = arith.constant 0 : index
    %c0_5 = arith.constant 0 : index
    %7 = vector.load %arg4[%c0_3, %c0_4, %c0_5] : memref<1x1x128xf32, #tpu.memory_space<vmem>>, vector<1x1x128xf32>
    %8 = vector.shape_cast %7 : vector<1x1x128xf32> to vector<1x128xf32>
    %cst_6 = arith.constant 0.000000e+00 : f32
    %9 = vector.broadcast %cst_6 : f32 to vector<1x128xf32>
    %10 = arith.cmpf ogt, %8, %9 : vector<1x128xf32>
    %c0_7 = arith.constant 0 : index
    %c0_8 = arith.constant 0 : index
    %11 = vector.load %arg2[%c0_7, %c0_8] : memref<8x32xbf16, #tpu.memory_space<vmem>>, vector<8x32xbf16>
    %cst_9 = arith.constant dense<0.000000e+00> : vector<8x128xf32>
    %12 = tpu.matmul %11, %6, %cst_9 {dimension_numbers = #tpu.dot_dimension_numbers<[1], [1], [0], [0], [0, 0, 1, 0], [], []>} : vector<8x32xbf16>, vector<128x32xbf16>, vector<8x128xf32> -> vector<8x128xf32>
    %c0_10 = arith.constant 0 : index
    %c0_11 = arith.constant 0 : index
    %13 = vector.load %arg3[%c0_10, %c0_11] : memref<8x1xf32, #tpu.memory_space<vmem>>, vector<8x1xf32>
    %14 = vector.broadcast %13 : vector<8x1xf32> to vector<8x128xf32>
    %15 = arith.addf %12, %14 : vector<8x128xf32>
    %16 = vector.extract_strided_slice %15 {offsets = [0, 0], sizes = [1, 128], strides = [1, 1]} : vector<8x128xf32> to vector<1x128xf32>
    %cst_12 = arith.constant 0xFF800000 : f32
    %17 = vector.broadcast %cst_12 : f32 to vector<1x128xf32>
    %18 = arith.select %10, %16, %17 : vector<1x128xi1>, vector<1x128xf32>
    %19 = vector.extract_strided_slice %15 {offsets = [1, 0], sizes = [1, 128], strides = [1, 1]} : vector<8x128xf32> to vector<1x128xf32>
    %cst_13 = arith.constant 0xFF800000 : f32
    %20 = vector.broadcast %cst_13 : f32 to vector<1x128xf32>
    %21 = arith.select %10, %19, %20 : vector<1x128xi1>, vector<1x128xf32>
    %22 = vector.extract_strided_slice %15 {offsets = [2, 0], sizes = [1, 128], strides = [1, 1]} : vector<8x128xf32> to vector<1x128xf32>
    %cst_14 = arith.constant 0.000000e+00 : f32
    %23 = vector.broadcast %cst_14 : f32 to vector<1x128xf32>
    %24 = arith.select %10, %22, %23 : vector<1x128xi1>, vector<1x128xf32>
    %25 = arith.addf %18, %24 : vector<1x128xf32>
    %26 = arith.addf %25, %21 : vector<1x128xf32>
    %c0_i32 = arith.constant 0 : i32
    %27 = vector.broadcast %c0_i32 : i32 to vector<1x128xi32>
    %28 = arith.cmpi sge, %0, %27 : vector<1x128xi32>
    %29 = arith.andi %28, %10 : vector<1x128xi1>
    %cst_15 = arith.constant 0xFF800000 : f32
    %30 = vector.broadcast %cst_15 : f32 to vector<1x128xf32>
    %31 = arith.select %29, %26, %30 : vector<1x128xi1>, vector<1x128xf32>
    %c1_i32 = arith.constant 1 : i32
    %32 = tpu.dynamic_rotate %18 by %c1_i32 dim 1 : vector<1x128xf32>, i32 -> vector<1x128xf32>
    %c1_i32_16 = arith.constant 1 : i32
    %33 = tpu.dynamic_rotate %24 by %c1_i32_16 dim 1 : vector<1x128xf32>, i32 -> vector<1x128xf32>
    %34 = arith.addf %24, %33 : vector<1x128xf32>
    %35 = arith.addf %32, %34 : vector<1x128xf32>
    %36 = arith.addf %35, %21 : vector<1x128xf32>
    %c1_i32_17 = arith.constant 1 : i32
    %37 = vector.broadcast %c1_i32_17 : i32 to vector<1x128xi32>
    %38 = arith.cmpi sge, %0, %37 : vector<1x128xi32>
    %39 = arith.andi %38, %10 : vector<1x128xi1>
    %cst_18 = arith.constant 0xFF800000 : f32
    %40 = vector.broadcast %cst_18 : f32 to vector<1x128xf32>
    %41 = arith.select %39, %36, %40 : vector<1x128xi1>, vector<1x128xf32>
    %c2_i32 = arith.constant 2 : i32
    %42 = tpu.dynamic_rotate %18 by %c2_i32 dim 1 : vector<1x128xf32>, i32 -> vector<1x128xf32>
    %c2_i32_19 = arith.constant 2 : i32
    %43 = tpu.dynamic_rotate %24 by %c2_i32_19 dim 1 : vector<1x128xf32>, i32 -> vector<1x128xf32>
    %44 = arith.addf %34, %43 : vector<1x128xf32>
    %45 = arith.addf %42, %44 : vector<1x128xf32>
    %46 = arith.addf %45, %21 : vector<1x128xf32>
    %c2_i32_20 = arith.constant 2 : i32
    %47 = vector.broadcast %c2_i32_20 : i32 to vector<1x128xi32>
    %48 = arith.cmpi sge, %0, %47 : vector<1x128xi32>
    %49 = arith.andi %48, %10 : vector<1x128xi1>
    %cst_21 = arith.constant 0xFF800000 : f32
    %50 = vector.broadcast %cst_21 : f32 to vector<1x128xf32>
    %51 = arith.select %49, %46, %50 : vector<1x128xi1>, vector<1x128xf32>
    %c3_i32 = arith.constant 3 : i32
    %52 = tpu.dynamic_rotate %18 by %c3_i32 dim 1 : vector<1x128xf32>, i32 -> vector<1x128xf32>
    %c3_i32_22 = arith.constant 3 : i32
    %53 = tpu.dynamic_rotate %24 by %c3_i32_22 dim 1 : vector<1x128xf32>, i32 -> vector<1x128xf32>
    %54 = arith.addf %44, %53 : vector<1x128xf32>
    %55 = arith.addf %52, %54 : vector<1x128xf32>
    %56 = arith.addf %55, %21 : vector<1x128xf32>
    %c3_i32_23 = arith.constant 3 : i32
    %57 = vector.broadcast %c3_i32_23 : i32 to vector<1x128xi32>
    %58 = arith.cmpi sge, %0, %57 : vector<1x128xi32>
    %59 = arith.andi %58, %10 : vector<1x128xi1>
    %cst_24 = arith.constant 0xFF800000 : f32
    %60 = vector.broadcast %cst_24 : f32 to vector<1x128xf32>
    %61 = arith.select %59, %56, %60 : vector<1x128xi1>, vector<1x128xf32>
    %cst_25 = arith.constant 0xFF800000 : f32
    %62 = vector.broadcast %cst_25 : f32 to vector<1x128xf32>
    %cst_26 = arith.constant 0xFF800000 : f32
    %63 = vector.broadcast %cst_26 : f32 to vector<1x128xf32>
    %cst_27 = arith.constant 0xFF800000 : f32
    %64 = vector.broadcast %cst_27 : f32 to vector<1x128xf32>
    %cst_28 = arith.constant 0xFF800000 : f32
    %65 = vector.broadcast %cst_28 : f32 to vector<1x128xf32>
    %66 = tpu.concatenate %31, %41, %51, %61, %62, %63, %64, %65 in 0 : vector<1x128xf32>, vector<1x128xf32>, vector<1x128xf32>, vector<1x128xf32>, vector<1x128xf32>, vector<1x128xf32>, vector<1x128xf32>, vector<1x128xf32> -> vector<8x128xf32>
    %c0_29 = arith.constant 0 : index
    %c0_30 = arith.constant 0 : index
    %c0_31 = arith.constant 0 : index
    %67 = vector.load %arg6[%c0_29, %c0_30, %c0_31] : memref<1x8x128xf32, #tpu.memory_space<vmem>>, vector<1x8x128xf32>
    %68 = vector.shape_cast %67 : vector<1x8x128xf32> to vector<8x128xf32>
    %69 = vector.shape_cast %66 : vector<8x128xf32> to vector<1x8x128xf32>
    tpu.vector_store %arg6[%c0_29, %c0_30, %c0_31], %69 {strides = array<i32>} : memref<1x8x128xf32, #tpu.memory_space<vmem>>, vector<1x8x128xf32>,
    %70 = arith.cmpi sge, %2, %1 : vector<8x128xi32>
    %c4_i32 = arith.constant 4 : i32
    %71 = vector.broadcast %c4_i32 : i32 to vector<8x128xi32>
    %72 = arith.cmpi slt, %1, %71 : vector<8x128xi32>
    %73 = arith.andi %70, %72 : vector<8x128xi1>
    %74 = vector.broadcast %10 : vector<1x128xi1> to vector<8x128xi1>
    %75 = arith.andi %73, %74 : vector<8x128xi1>
    %c0_32 = arith.constant 0 : index
    %c0_33 = arith.constant 0 : index
    %c0_34 = arith.constant 0 : index
    %76 = vector.load %arg5[%c0_32, %c0_33, %c0_34] : memref<1x8x128xf32, #tpu.memory_space<vmem>>, vector<1x8x128xf32>
    %77 = vector.shape_cast %76 : vector<1x8x128xf32> to vector<8x128xf32>
    %cst_35 = arith.constant 0.000000e+00 : f32
    %78 = vector.broadcast %cst_35 : f32 to vector<8x128xf32>
    %79 = arith.select %75, %66, %78 : vector<8x128xi1>, vector<8x128xf32>
    %cst_36 = arith.constant 0.000000e+00 : f32
    %80 = vector.broadcast %cst_36 : f32 to vector<8x128xf32>
    %81 = arith.maximumf %79, %80 : vector<8x128xf32>
    %82 = arith.mulf %79, %77 : vector<8x128xf32>
    %83 = arith.subf %81, %82 : vector<8x128xf32>
    %84 = math.absf %79 : vector<8x128xf32>
    %cst_37 = arith.constant 0.000000e+00 : f32
    %85 = vector.broadcast %cst_37 : f32 to vector<8x128xf32>
    %86 = arith.subf %85, %84 : vector<8x128xf32>
    %87 = math.exp %86 : vector<8x128xf32>
    %88 = math.log1p %87 : vector<8x128xf32>
    %89 = arith.addf %83, %88 : vector<8x128xf32>
    %cst_38 = arith.constant 0.000000e+00 : f32
    %90 = vector.broadcast %cst_38 : f32 to vector<8x128xf32>
    %91 = arith.select %75, %89, %90 : vector<8x128xi1>, vector<8x128xf32>
    %cst_39 = arith.constant dense<0.000000e+00> : vector<8xf32>
    %92 = vector.multi_reduction <add>, %91, %cst_39 [1] : vector<8x128xf32> to vector<8xf32>
    %93 = vector.shape_cast %92 : vector<8xf32> to vector<8x1xf32>
    %cst_40 = arith.constant dense<0.000000e+00> : vector<1xf32>
    %94 = vector.multi_reduction <add>, %93, %cst_40 [0] : vector<8x1xf32> to vector<1xf32>
    %95 = vector.shape_cast %94 : vector<1xf32> to vector<1x1xf32>
    %96 = arith.addf %3, %95 : vector<1x1xf32>
    %97 = arith.extui %75 : vector<8x128xi1> to vector<8x128xi32>
    %98 = arith.sitofp %97 : vector<8x128xi32> to vector<8x128xf32>
    %cst_41 = arith.constant dense<0.000000e+00> : vector<8xf32>
    %99 = vector.multi_reduction <add>, %98, %cst_41 [1] : vector<8x128xf32> to vector<8xf32>
    %100 = vector.shape_cast %99 : vector<8xf32> to vector<8x1xf32>
    %cst_42 = arith.constant dense<0.000000e+00> : vector<1xf32>
    %101 = vector.multi_reduction <add>, %100, %cst_42 [0] : vector<8x1xf32> to vector<1xf32>
    %102 = vector.shape_cast %101 : vector<1xf32> to vector<1x1xf32>
    %103 = arith.addf %4, %102 : vector<1x1xf32>
    %104 = tpu.iota {dimensions = array<i32: 1>} : vector<1x128xi32>
    %c0_i32_43 = arith.constant 0 : i32
    %105 = vector.broadcast %c0_i32_43 : i32 to vector<1x128xi32>
    %106 = arith.cmpi eq, %104, %105 : vector<1x128xi32>
    %cst_44 = arith.constant 0.000000e+00 : f32
    %107 = vector.shape_cast %96 : vector<1x1xf32> to vector<1x1xf32>
    %108 = vector.broadcast %107 : vector<1x1xf32> to vector<1x128xf32>
    %109 = vector.broadcast %cst_44 : f32 to vector<1x128xf32>
    %110 = arith.select %106, %108, %109 : vector<1x128xi1>, vector<1x128xf32>
    %c1_i32_45 = arith.constant 1 : i32
    %111 = vector.broadcast %c1_i32_45 : i32 to vector<1x128xi32>
    %112 = arith.cmpi eq, %104, %111 : vector<1x128xi32>
    %cst_46 = arith.constant 0.000000e+00 : f32
    %113 = vector.shape_cast %103 : vector<1x1xf32> to vector<1x1xf32>
    %114 = vector.broadcast %113 : vector<1x1xf32> to vector<1x128xf32>
    %115 = vector.broadcast %cst_46 : f32 to vector<1x128xf32>
    %116 = arith.select %112, %114, %115 : vector<1x128xi1>, vector<1x128xf32>
    %117 = arith.addf %110, %116 : vector<1x128xf32>
    %c0_47 = arith.constant 0 : index
    %c0_48 = arith.constant 0 : index
    %c0_49 = arith.constant 0 : index
    %118 = vector.load %arg7[%c0_47, %c0_48, %c0_49] : memref<1x1x128xf32, #tpu.memory_space<vmem>>, vector<1x1x128xf32>
    %119 = vector.shape_cast %118 : vector<1x1x128xf32> to vector<1x128xf32>
    %120 = vector.shape_cast %117 : vector<1x128xf32> to vector<1x1x128xf32>
    tpu.vector_store %arg7[%c0_47, %c0_48, %c0_49], %120 {strides = array<i32>} : memref<1x1x128xf32, #tpu.memory_space<vmem>>, vector<1x1x128xf32>,
    return
  }
  func.func @transform_0(%arg0: i32) -> (i32, i32, i32) {
    %c0_i32 = arith.constant 0 : i32
    %c0_i32_0 = arith.constant 0 : i32
    %c0_i32_1 = arith.constant 0 : i32
    return %arg0, %c0_i32, %c0_i32_0 : i32, i32, i32
  }
  func.func @transform_1(%arg0: i32) -> (i32, i32) {
    %c0_i32 = arith.constant 0 : i32
    %c0_i32_0 = arith.constant 0 : i32
    %c0_i32_1 = arith.constant 0 : i32
    return %c0_i32, %c0_i32_0 : i32, i32
  }
  func.func @transform_2(%arg0: i32) -> (i32, i32) {
    %c0_i32 = arith.constant 0 : i32
    %c0_i32_0 = arith.constant 0 : i32
    %c0_i32_1 = arith.constant 0 : i32
    return %c0_i32, %c0_i32_0 : i32, i32
  }
  func.func @transform_3(%arg0: i32) -> (i32, i32, i32) {
    %c0_i32 = arith.constant 0 : i32
    %c0_i32_0 = arith.constant 0 : i32
    %c0_i32_1 = arith.constant 0 : i32
    return %arg0, %c0_i32, %c0_i32_0 : i32, i32, i32
  }
  func.func @transform_4(%arg0: i32) -> (i32, i32, i32) {
    %c0_i32 = arith.constant 0 : i32
    %c0_i32_0 = arith.constant 0 : i32
    %c0_i32_1 = arith.constant 0 : i32
    return %arg0, %c0_i32, %c0_i32_0 : i32, i32, i32
  }
  func.func @transform_5(%arg0: i32) -> (i32, i32, i32) {
    %c0_i32 = arith.constant 0 : i32
    %c0_i32_0 = arith.constant 0 : i32
    %c0_i32_1 = arith.constant 0 : i32
    return %arg0, %c0_i32, %c0_i32_0 : i32, i32, i32
  }
  func.func @transform_6(%arg0: i32) -> (i32, i32, i32) {
    %c0_i32 = arith.constant 0 : i32
    %c0_i32_0 = arith.constant 0 : i32
    %c0_i32_1 = arith.constant 0 : i32
    return %arg0, %c0_i32, %c0_i32_0 : i32, i32, i32
  }
}

</mosaic_0001>

<llo_original>
// kernel: tpu_custom_call.1
$region0: #{tpu_custom_call.1}
  #allocation0 [shape = 'u32[]', space=smem, size = 0x4, offset = 0x4, fixed_abs, tag = 'smem constant byte address 0x4 - core index']
  #allocation1 [shape = 'u32[144,128]{1,0:T(1,128)}', space=vmem, size = 0x12000, scoped, tag = 'internal scratch']
  %s0 = inlined_call_operand.vmem [shape: bf16[2,128,32], index: 0, kind: input, shape index: {}]
  %s1 = inlined_call_operand.vmem [shape: bf16[8,32], index: 1, kind: input, shape index: {}]
  %s2 = inlined_call_operand.vmem [shape: f32[8,1], index: 2, kind: input, shape index: {}]
  %s3 = inlined_call_operand.vmem [shape: f32[2,1,128], index: 3, kind: input, shape index: {}]
  %s4 = inlined_call_operand.vmem [shape: f32[2,8,128], index: 4, kind: input, shape index: {}]
  %s5 = inlined_call_operand.hbm [shape: f32[2,8,128], index: 5, kind: output, shape index: {0}]
  %s6 = inlined_call_operand.hbm [shape: f32[2,1,128], index: 6, kind: output, shape index: {1}]
  %7 = xla_tuple %s5, %s6
  %s8 = sld [smem:[#allocation0]]
  $region61: #{tpu_custom_call.1} parent=0
    _
  %s10 = ssub.s32 1, %s8
  %s11 = scalar_select 0, %s10, %s8
  $region1: #{tpu_custom_call.1} parent=0
    #allocation2 [shape = 'u8[8192]{0}', space=vmem, size = 0x2000, scoped, tag = 'output window, operand 0']
    #allocation3 [shape = 's32[2]{0}', space=sflag, size = 0x8, scoped, tag = 'scoped memory for tpu_custom_call.1']
    #allocation4 [shape = 'u8[1024]{0}', space=vmem, size = 0x400, scoped, tag = 'output window, operand 1']
    #allocation5 [shape = 's32[2]{0}', space=sflag, size = 0x8, scoped, tag = 'scoped memory for tpu_custom_call.1']
    %12 = vsyncpa [#allocation3], 0
    %s13 = scalar_lea.sflag [#allocation3], 1
    %14 = vsyncpa %s13, 0
    %15 = vsyncpa [#allocation5], 0
    %s16 = scalar_lea.sflag [#allocation5], 1
    %17 = vsyncpa %s16, 0
    loop: start=0, step=1, limit=4
    $region2: #{tpu_custom_call.1} parent=1 // loop_pre_header
      _
    $region3: #{tpu_custom_call.1} parent=1 // loop_header
      %s19 = sphi 0, %s23
      %p20 = scmp.ge.s32.totalorder %s19, 4
      %s29 = sphi 0, %s31
      %s32 = sphi 0, %s29
      %s33 = sphi 0, %s32
      %s49 = sphi 0, %s33
      %s53 = sphi 0, %s53
      %s55 = sphi 0, %s53
      %s56 = sphi 0, %s55
      %s70 = sphi 0, %s56
      %s74 = sphi 0, %s74
      %s76 = sphi 0, %s74
      %s77 = sphi 0, %s76
      %s91 = sphi 0, %s77
      %s97 = sphi 0, %s99
      %s100 = sphi 0, %s97
      %s101 = sphi 0, %s100
      %s117 = sphi 0, %s101
      %s123 = sphi 0, %s125
      %s126 = sphi 0, %s123
      %s127 = sphi 0, %s126
      %s143 = sphi 0, %s127
      %s149 = sphi 0, %s151
      %s152 = sphi 0, %s149
      %s153 = sphi 0, %s152
      %s169 = sphi 0, %s153
      %s175 = sphi 0, %s177
      %s178 = sphi 0, %s175
      %s179 = sphi 0, %s178
      %s195 = sphi 0, %s179
    $region4: #{tpu_custom_call.1} parent=1 // loop_header_branch
      %22 = sbr.rel (%p20) target = $region8
    $region5: #{tpu_custom_call.1} parent=1 // loop_body
      %s24 = ssub.s32 %s19, 1
      %s25 = ssub.s32 %s19, 2
      %s26 = sadd.s32 %s19, 1
      %s27 = ssub.s32 %s19, %s26
      %p28 = scmp.eq.s32.totalorder %s27, 0
      %s30 = sadd.s32 %s29, 1
      %s31 = scalar_select %p28, %s29, %s30
      %p34 = pneg %p28
      %p35 = scmp.eq.s32.totalorder %s19, 1
      %p36 = por %p34, %p35
      %p37 = scmp.ne.s32.totalorder %s29, %s32
      %p38 = scmp.eq.s32.totalorder %s19, 0
      %p39 = por %p37, %p38
      %p40 = scmp.ne.s32.totalorder %s29, %s32
      %p41 = scmp.eq.s32.totalorder %s24, 1
      %p42 = por %p40, %p41
      %p43 = scmp.ne.s32.totalorder %s32, %s33
      %p44 = scmp.eq.s32.totalorder %s24, 0
      %p45 = por %p43, %p44
      %p46 = scmp.ne.s32.totalorder %s32, %s33
      %p47 = scmp.eq.s32.totalorder %s25, 1
      %p48 = por %p46, %p47
      %p50 = scmp.ne.s32.totalorder %s33, %s49
      %p51 = scmp.eq.s32.totalorder %s25, 0
      %p52 = por %p50, %p51
      %s54 = sadd.s32 %s53, 1
      %p57 = scmp.eq.s32.totalorder %s19, 1
      %p58 = scmp.ne.s32.totalorder %s53, %s55
      %p59 = scmp.eq.s32.totalorder %s19, 0
      %p60 = por %p58, %p59
      %p61 = scmp.ne.s32.totalorder %s53, %s55
      %p62 = scmp.eq.s32.totalorder %s24, 1
      %p63 = por %p61, %p62
      %p64 = scmp.ne.s32.totalorder %s55, %s56
      %p65 = scmp.eq.s32.totalorder %s24, 0
      %p66 = por %p64, %p65
      %p67 = scmp.ne.s32.totalorder %s55, %s56
      %p68 = scmp.eq.s32.totalorder %s25, 1
      %p69 = por %p67, %p68
      %p71 = scmp.ne.s32.totalorder %s56, %s70
      %p72 = scmp.eq.s32.totalorder %s25, 0
      %p73 = por %p71, %p72
      %s75 = sadd.s32 %s74, 1
      %p78 = scmp.eq.s32.totalorder %s19, 1
      %p79 = scmp.ne.s32.totalorder %s74, %s76
      %p80 = scmp.eq.s32.totalorder %s19, 0
      %p81 = por %p79, %p80
      %p82 = scmp.ne.s32.totalorder %s74, %s76
      %p83 = scmp.eq.s32.totalorder %s24, 1
      %p84 = por %p82, %p83
      %p85 = scmp.ne.s32.totalorder %s76, %s77
      %p86 = scmp.eq.s32.totalorder %s24, 0
      %p87 = por %p85, %p86
      %p88 = scmp.ne.s32.totalorder %s76, %s77
      %p89 = scmp.eq.s32.totalorder %s25, 1
      %p90 = por %p88, %p89
      %p92 = scmp.ne.s32.totalorder %s77, %s91
      %p93 = scmp.eq.s32.totalorder %s25, 0
      %p94 = por %p92, %p93
      %s95 = ssub.s32 %s19, %s26
      %p96 = scmp.eq.s32.totalorder %s95, 0
      %s98 = sadd.s32 %s97, 1
      %s99 = scalar_select %p96, %s97, %s98
      %p102 = pneg %p96
      %p103 = scmp.eq.s32.totalorder %s19, 1
      %p104 = por %p102, %p103
      %p105 = scmp.ne.s32.totalorder %s97, %s100
      %p106 = scmp.eq.s32.totalorder %s19, 0
      %p107 = por %p105, %p106
      %p108 = scmp.ne.s32.totalorder %s97, %s100
      %p109 = scmp.eq.s32.totalorder %s24, 1
      %p110 = por %p108, %p109
      %p111 = scmp.ne.s32.totalorder %s100, %s101
      %p112 = scmp.eq.s32.totalorder %s24, 0
      %p113 = por %p111, %p112
      %p114 = scmp.ne.s32.totalorder %s100, %s101
      %p115 = scmp.eq.s32.totalorder %s25, 1
      %p116 = por %p114, %p115
      %p118 = scmp.ne.s32.totalorder %s101, %s117
      %p119 = scmp.eq.s32.totalorder %s25, 0
      %p120 = por %p118, %p119
      %s121 = ssub.s32 %s19, %s26
      %p122 = scmp.eq.s32.totalorder %s121, 0
      %s124 = sadd.s32 %s123, 1
      %s125 = scalar_select %p122, %s123, %s124
      %p128 = pneg %p122
      %p129 = scmp.eq.s32.totalorder %s19, 1
      %p130 = por %p128, %p129
      %p131 = scmp.ne.s32.totalorder %s123, %s126
      %p132 = scmp.eq.s32.totalorder %s19, 0
      %p133 = por %p131, %p132
      %p134 = scmp.ne.s32.totalorder %s123, %s126
      %p135 = scmp.eq.s32.totalorder %s24, 1
      %p136 = por %p134, %p135
      %p137 = scmp.ne.s32.totalorder %s126, %s127
      %p138 = scmp.eq.s32.totalorder %s24, 0
      %p139 = por %p137, %p138
      %p140 = scmp.ne.s32.totalorder %s126, %s127
      %p141 = scmp.eq.s32.totalorder %s25, 1
      %p142 = por %p140, %p141
      %p144 = scmp.ne.s32.totalorder %s127, %s143
      %p145 = scmp.eq.s32.totalorder %s25, 0
      %p146 = por %p144, %p145
      %s147 = ssub.s32 %s19, %s26
      %p148 = scmp.eq.s32.totalorder %s147, 0
      %s150 = sadd.s32 %s149, 1
      %s151 = scalar_select %p148, %s149, %s150
      %p154 = pneg %p148
      %p155 = scmp.eq.s32.totalorder %s19, 1
      %p156 = por %p154, %p155
      %p157 = scmp.ne.s32.totalorder %s149, %s152
      %p158 = scmp.eq.s32.totalorder %s19, 0
      %p159 = por %p157, %p158
      %p160 = scmp.ne.s32.totalorder %s149, %s152
      %p161 = scmp.eq.s32.totalorder %s24, 1
      %p162 = por %p160, %p161
      %p163 = scmp.ne.s32.totalorder %s152, %s153
      %p164 = scmp.eq.s32.totalorder %s24, 0
      %p165 = por %p163, %p164
      %p166 = scmp.ne.s32.totalorder %s152, %s153
      %p167 = scmp.eq.s32.totalorder %s25, 1
      %p168 = por %p166, %p167
      %p170 = scmp.ne.s32.totalorder %s153, %s169
      %p171 = scmp.eq.s32.totalorder %s25, 0
      %p172 = por %p170, %p171
      %s173 = ssub.s32 %s19, %s26
      %p174 = scmp.eq.s32.totalorder %s173, 0
      %s176 = sadd.s32 %s175, 1
      %s177 = scalar_select %p174, %s175, %s176
      %p180 = pneg %p174
      %p181 = scmp.eq.s32.totalorder %s19, 1
      %p182 = por %p180, %p181
      %p183 = scmp.ne.s32.totalorder %s175, %s178
      %p184 = scmp.eq.s32.totalorder %s19, 0
      %p185 = por %p183, %p184
      %p186 = scmp.ne.s32.totalorder %s175, %s178
      %p187 = scmp.eq.s32.totalorder %s24, 1
      %p188 = por %p186, %p187
      %p189 = scmp.ne.s32.totalorder %s178, %s179
      %p190 = scmp.eq.s32.totalorder %s24, 0
      %p191 = por %p189, %p190
      %p192 = scmp.ne.s32.totalorder %s178, %s179
      %p193 = scmp.eq.s32.totalorder %s25, 1
      %p194 = por %p192, %p193
      %p196 = scmp.ne.s32.totalorder %s179, %s195
      %p197 = scmp.eq.s32.totalorder %s25, 0
      %p198 = por %p196, %p197
      %p199 = scmp.le.s32.totalorder 1, %s19
      %p200 = scmp.lt.s32.totalorder %s19, 3
      %p201 = pnand %p199, %p200
      %p202 = pneg %p201
      // Predicated region
      $region9: #{tpu_custom_call.1} parent=5 // pred_check
        _
      $region10: #{tpu_custom_call.1} parent=5 // pred_check_branch
        %204 = sbr.rel (%p201) target = $region12
      $region11: #{tpu_custom_call.1} parent=5 // pred_region
        %s205 = ssub.s32 %s19, 1
        // Predicated region
        $region13: #{tpu_custom_call.1} parent=11 // pred_check
          %p206 = pneg %p66
        $region14: #{tpu_custom_call.1} parent=11 // pred_check_branch
          %208 = sbr.rel (%p206) target = $region16
        $region15: #{tpu_custom_call.1} parent=11 // pred_region
          _
        $region16: #{tpu_custom_call.1} parent=11 // pred_fallthru
          _
        // Predicated region
        $region17: #{tpu_custom_call.1} parent=11 // pred_check
          %p209 = pneg %p87
        $region18: #{tpu_custom_call.1} parent=11 // pred_check_branch
          %211 = sbr.rel (%p209) target = $region20
        $region19: #{tpu_custom_call.1} parent=11 // pred_region
          _
        $region20: #{tpu_custom_call.1} parent=11 // pred_fallthru
          _
      $region12: #{tpu_custom_call.1} parent=5 // pred_fallthru
        _
      %p212 = scmp.lt.s32.totalorder %s19, 2
      // Predicated region
      $region21: #{tpu_custom_call.1} parent=5 // pred_check
        %p213 = pneg %p212
      $region22: #{tpu_custom_call.1} parent=5 // pred_check_branch
        %215 = sbr.rel (%p213) target = $region24
      $region23: #{tpu_custom_call.1} parent=5 // pred_region
        // Predicated region
        $region25: #{tpu_custom_call.1} parent=23 // pred_check
          %p216 = pneg %p39
        $region26: #{tpu_custom_call.1} parent=23 // pred_check_branch
          %218 = sbr.rel (%p216) target = $region28
        $region27: #{tpu_custom_call.1} parent=23 // pred_region
          %p219 = scmp.lt.s32.totalorder %s19, 1
          %s220 = scalar_select %p219, %s19, 1
          %s221 = smul.addr %s220, 16
          %s222 = smul.addr %s221, 4
          %s223 = scalar_lea.vmem %s0, %s222
        $region28: #{tpu_custom_call.1} parent=23 // pred_fallthru
          _
        // Predicated region
        $region29: #{tpu_custom_call.1} parent=23 // pred_check
          %p224 = pneg %p107
        $region30: #{tpu_custom_call.1} parent=23 // pred_check_branch
          %226 = sbr.rel (%p224) target = $region32
        $region31: #{tpu_custom_call.1} parent=23 // pred_region
          %p227 = scmp.lt.s32.totalorder %s19, 1
          %s228 = scalar_select %p227, %s19, 1
          %s229 = scalar_lea.vmem %s3, %s228
        $region32: #{tpu_custom_call.1} parent=23 // pred_fallthru
          _
        // Predicated region
        $region33: #{tpu_custom_call.1} parent=23 // pred_check
          %p230 = pneg %p133
        $region34: #{tpu_custom_call.1} parent=23 // pred_check_branch
          %232 = sbr.rel (%p230) target = $region36
        $region35: #{tpu_custom_call.1} parent=23 // pred_region
          %p233 = scmp.lt.s32.totalorder %s19, 1
          %s234 = scalar_select %p233, %s19, 1
          %s235 = smul.addr %s234, 8
          %s236 = scalar_lea.vmem %s4, %s235
        $region36: #{tpu_custom_call.1} parent=23 // pred_fallthru
          _
      $region24: #{tpu_custom_call.1} parent=5 // pred_fallthru
        _
      %p237 = scmp.le.s32.totalorder 1, %s19
      %p238 = scmp.lt.s32.totalorder %s19, 3
      %p239 = pnand %p237, %p238
      %p240 = pneg %p239
      // Predicated region
      $region37: #{tpu_custom_call.1} parent=5 // pred_check
        _
      $region38: #{tpu_custom_call.1} parent=5 // pred_check_branch
        %242 = sbr.rel (%p239) target = $region40
      $region39: #{tpu_custom_call.1} parent=5 // pred_region
        %s243 = ssub.s32 %s19, 1
        %p244 = scmp.lt.s32.totalorder %s24, 1
        %s245 = scalar_select %p244, %s24, 1
        %s246 = smul.addr %s245, 16
        %s247 = smul.addr %s246, 4
        %s248 = scalar_lea.vmem %s0, %s247
        %p249 = pneg %p45
        %p250 = pneg %p42
        %p251 = pneg %p66
        %p252 = pneg %p63
        %p253 = pneg %p87
        %p254 = pneg %p84
        %p255 = scmp.lt.s32.totalorder %s24, 1
        %s256 = scalar_select %p255, %s24, 1
        %s257 = scalar_lea.vmem %s3, %s256
        %p258 = pneg %p113
        %p259 = pneg %p110
        %p260 = scmp.lt.s32.totalorder %s24, 1
        %s261 = scalar_select %p260, %s24, 1
        %s262 = smul.addr %s261, 8
        %s263 = scalar_lea.vmem %s4, %s262
        %p264 = pneg %p139
        %p265 = pneg %p136
        %p266 = pneg %p165
        %p267 = pneg %p162
        %s268 = sand.u32 %s152, 1
        %s269 = scalar_lea.sflag [#allocation3], %s268
        %s270 = sand.u32 %s152, 1
        %s271 = smul.addr %s270, 8
        %s272 = scalar_lea.vmem [#allocation2], %s271
        %p273 = pneg %p191
        %p274 = pneg %p188
        %s275 = sand.u32 %s178, 1
        %s276 = scalar_lea.sflag [#allocation5], %s275
        %s277 = sand.u32 %s178, 1
        %s278 = scalar_lea.vmem [#allocation4], %s277
        %p279 = scmp.lt.s32.totalorder %s24, 1
        %s280 = scalar_select %p279, %s24, 1
        %s281 = smul.addr %s280, 16
        %s282 = smul.addr %s281, 4
        %s283 = scalar_lea.vmem %s0, %s282
        %p284 = scmp.lt.s32.totalorder %s24, 1
        %s285 = scalar_select %p284, %s24, 1
        %s286 = scalar_lea.vmem %s3, %s285
        %p287 = scmp.lt.s32.totalorder %s24, 1
        %s288 = scalar_select %p287, %s24, 1
        %s289 = smul.addr %s288, 8
        %s290 = scalar_lea.vmem %s4, %s289
        %v292 = vlaneseq
        %v293 = vand.u32 %v292, 127
        %v294 = vlaneseq
        %v295 = vshrl.u32 %v294, 7
        %v296 = vld [vmem:[%s283] sm:$0xf]
        %v297 = vld [vmem:[%s283 + $0x4] sm:$0xf]
        %v298 = vld [vmem:[%s283 + $0x8] sm:$0xf]
        %v299 = vld [vmem:[%s283 + $0xc] sm:$0xf]
        %v300 = vld [vmem:[%s283 + $0x10] sm:$0xf]
        %v301 = vld [vmem:[%s283 + $0x14] sm:$0xf]
        %v302 = vld [vmem:[%s283 + $0x18] sm:$0xf]
        %v303 = vld [vmem:[%s283 + $0x1c] sm:$0xf]
        %v304 = vld [vmem:[%s283 + $0x20] sm:$0xf]
        %v305 = vld [vmem:[%s283 + $0x24] sm:$0xf]
        %v306 = vld [vmem:[%s283 + $0x28] sm:$0xf]
        %v307 = vld [vmem:[%s283 + $0x2c] sm:$0xf]
        %v308 = vld [vmem:[%s283 + $0x30] sm:$0xf]
        %v309 = vld [vmem:[%s283 + $0x34] sm:$0xf]
        %v310 = vld [vmem:[%s283 + $0x38] sm:$0xf]
        %v311 = vld [vmem:[%s283 + $0x3c] sm:$0xf]
        %v312 = vld [vmem:[%s286] sm:$0x1]
        %vm313 = vcmp.gt.f32.partialorder %v312, 0.0
        %v314 = vld [vmem:[%s1] sm:$0xf]
        %v315 = vld [vmem:[%s2] sm:$0xff]
        %317 = vset.pattern.permute.xlu0 0
        %318 = vperm.xlu0 %317, %v315
        %v319 = vpop.permute.xlu0 %318
        %v337 = vunpack.c.l.b16 %v296
        %v338 = vunpack.c.l.b16 %v297
        %v339 = vunpack.c.l.b16 %v298
        %v340 = vunpack.c.l.b16 %v299
        %v341 = vunpack.c.l.b16 %v300
        %v342 = vunpack.c.l.b16 %v301
        %v343 = vunpack.c.l.b16 %v302
        %v344 = vunpack.c.l.b16 %v303
        %v345 = vunpack.c.l.b16 %v304
        %v346 = vunpack.c.l.b16 %v305
        %v347 = vunpack.c.l.b16 %v306
        %v348 = vunpack.c.l.b16 %v307
        %v349 = vunpack.c.l.b16 %v308
        %v350 = vunpack.c.l.b16 %v309
        %v351 = vunpack.c.l.b16 %v310
        %v352 = vunpack.c.l.b16 %v311
        %v353 = vpack.c.b16 %v338, %v337
        %v354 = vpack.c.b16 %v340, %v339
        %v355 = vpack.c.b16 %v342, %v341
        %v356 = vpack.c.b16 %v344, %v343
        %v357 = vpack.c.b16 %v346, %v345
        %v358 = vpack.c.b16 %v348, %v347
        %v359 = vpack.c.b16 %v350, %v349
        %v360 = vpack.c.b16 %v352, %v351
        %vm361 = vcmask 261120
        %v363 = vsel %vm361, %v314, 0
        %v366 = vsel %vm361, %v353, 0
        %v369 = vsel %vm361, %v354, 0
        %v372 = vsel %vm361, %v355, 0
        %v375 = vsel %vm361, %v356, 0
        %v378 = vsel %vm361, %v357, 0
        %v381 = vsel %vm361, %v358, 0
        %v384 = vsel %vm361, %v359, 0
        %v387 = vsel %vm361, %v360, 0
        %389 = vmatprep.subr.bf16.mxu0 0
        %390 = vmatpush1.bf16.xpose.msra.mxu0 %v387
        %391 = vmatprep.subr.bf16.mxu0 0
        %392 = vmatpush1.bf16.xpose.msra.mxu0 %v384
        %393 = vmatprep.subr.bf16.mxu0 0
        %394 = vmatpush1.bf16.xpose.msra.mxu0 %v381
        %395 = vmatprep.subr.bf16.mxu0 0
        %396 = vmatpush1.bf16.xpose.msra.mxu0 %v378
        %397 = vmatprep.subr.bf16.mxu0 0
        %398 = vmatpush1.bf16.xpose.msra.mxu0 %v375
        %399 = vmatprep.subr.bf16.mxu0 0
        %400 = vmatpush1.bf16.xpose.msra.mxu0 %v372
        %401 = vmatprep.subr.bf16.mxu0 0
        %402 = vmatpush1.bf16.xpose.msra.mxu0 %v369
        %403 = vmatprep.subr.bf16.mxu0 0
        %404 = vmatpush1.bf16.xpose.msra.mxu0 %v366
        %405 = vmatprep.subr.bf16.mxu0 0
        %406 = vmatpush2.bf16.xpose.msra.mxu0 0
        %407 = vmatprep.subr.bf16.mxu0 0
        %408 = vmatpush2.bf16.xpose.msra.mxu0 0
        %409 = vmatprep.subr.bf16.mxu0 0
        %410 = vmatpush2.bf16.xpose.msra.mxu0 0
        %411 = vmatprep.subr.bf16.mxu0 0
        %412 = vmatpush2.bf16.xpose.msra.mxu0 0
        %413 = vmatprep.subr.bf16.mxu0 0
        %414 = vmatpush2.bf16.xpose.msra.mxu0 0
        %415 = vmatprep.subr.bf16.mxu0 0
        %416 = vmatpush2.bf16.xpose.msra.mxu0 0
        %417 = vmatprep.subr.bf16.mxu0 0
        %418 = vmatpush2.bf16.xpose.msra.mxu0 0
        %419 = vmatprep.subr.bf16.mxu0 0
        %420 = vmatpush2.bf16.xpose.msra.mxu0 0
        %421 = vmatprep.mubr.bf16.mxu0 0
        %422 = vmatmul.mubr.bf16.gmra.mxu0 %v363
        %v423 = vpop.f32.mrf.mxu0
        %v424 = vadd.f32 %v319, %v423
        %v425 = vpop.f32.mrf.mxu0
        %v426 = vpop.f32.mrf.mxu0
        %v427 = vpop.f32.mrf.mxu0
        %428 = vdwg.mxu0
        %v429 = vsel %vm313, %v424, -inf
        %v432 = vunpack.c.l.s4 1966171168
        %v433 = vunpack.c.0.s8 %v432
        %v434 = vlaneseq
        %v435 = vshrl.u32 %v434, 7
        %v436 = vsub.s32 %v433, %v435
        %v437 = vrot.slane %v424, %v436
        %v438 = vcombine.high %v437, %v437
        %v440 = vunpack.c.l.s4 1966171168
        %v441 = vunpack.c.0.s8 %v440
        %v442 = vlaneseq
        %v443 = vshrl.u32 %v442, 7
        %v444 = vsub.s32 %v441, %v443
        %v445 = vrot.slane %v437, %v444
        %v447 = vunpack.c.l.s4 1966171168
        %v448 = vunpack.c.0.s8 %v447
        %v449 = vlaneseq
        %v450 = vshrl.u32 %v449, 7
        %v451 = vsub.s32 %v448, %v450
        %v452 = vrot.slane %v438, %v451
        %v454 = vsel %vm313, %v452, -inf
        %v455 = vcombine.high %v445, %v445
        %v457 = vsel %vm313, %v455, 0.0
        %v458 = vadd.f32 %v429, %v457
        %v459 = vadd.f32 %v458, %v454
        %vm460 = vcmp.ge.s32.totalorder %v293, 0
        %vm461 = vmand %vm460, %vm313
        %v462 = vsel %vm461, %v459, -inf
        %463 = vrot.lane.b32.xlu0 %v429, 1
        %v464 = vpop.permute.xlu0 %463
        %465 = vrot.lane.b32.xlu0 %v457, 1
        %v466 = vpop.permute.xlu0 %465
        %v467 = vadd.f32 %v457, %v466
        %v468 = vadd.f32 %v464, %v467
        %v469 = vadd.f32 %v468, %v454
        %vm470 = vcmp.ge.s32.totalorder %v293, 1
        %vm471 = vmand %vm470, %vm313
        %v472 = vsel %vm471, %v469, -inf
        %473 = vrot.lane.b32.xlu0 %v429, 2
        %v474 = vpop.permute.xlu0 %473
        %475 = vrot.lane.b32.xlu0 %v457, 2
        %v476 = vpop.permute.xlu0 %475
        %v477 = vadd.f32 %v467, %v476
        %v478 = vadd.f32 %v474, %v477
        %v479 = vadd.f32 %v478, %v454
        %vm480 = vcmp.ge.s32.totalorder %v293, 2
        %vm481 = vmand %vm480, %vm313
        %v482 = vsel %vm481, %v479, -inf
        %483 = vrot.lane.b32.xlu0 %v429, 3
        %v484 = vpop.permute.xlu0 %483
        %485 = vrot.lane.b32.xlu0 %v457, 3
        %v486 = vpop.permute.xlu0 %485
        %v487 = vadd.f32 %v477, %v486
        %v488 = vadd.f32 %v484, %v487
        %v489 = vadd.f32 %v488, %v454
        %vm490 = vcmp.ge.s32.totalorder %v293, 3
        %vm491 = vmand %vm490, %vm313
        %v492 = vsel %vm491, %v489, -inf
        %v494 = vrot.slane %v472, 7
        %v497 = vrot.slane %v482, 6
        %v500 = vrot.slane %v492, 5
        %vm502 = vcmask 1040384
        %v503 = vsel %vm502, %v462, %v494
        %vm504 = vcmask 1041408
        %v505 = vsel %vm504, %v503, %v497
        %vm506 = vcmask 1042432
        %v507 = vsel %vm506, %v505, %v500
        %vm508 = vcmask 1043456
        %v509 = vsel %vm508, %v507, -inf
        %vm510 = vcmask 1044480
        %v511 = vsel %vm510, %v509, -inf
        %vm512 = vcmask 1045504
        %v513 = vsel %vm512, %v511, -inf
        %vm514 = vcmask 1046528
        %v515 = vsel %vm514, %v513, -inf
        %516 = vst [vmem:[%s272] sm:$0xff] %v515
        %vm517 = vcmp.ge.s32.totalorder %v293, %v295
        %vm518 = vcmp.lt.s32.totalorder %v295, 4
        %vm519 = vmand %vm517, %vm518
        %v520 = vsel %vm313, 1, 0
        %v521 = vlaneseq
        %v522 = vshrl.u32 %v521, 7
        %v523 = vsub.s32 0, %v522
        %v524 = vrot.slane %v520, %v523
        %vm525 = vcmp.eq.s32.totalorder %v524, 1
        %vm526 = vmand %vm519, %vm525
        %v527 = vld [vmem:[%s290] sm:$0xff]
        %v528 = vsel %vm526, %v515, 0.0
        %v529 = vmax.f32 %v528, 0.0
        %v530 = vmul.f32 %v528, %v527
        %v531 = vsub.f32 %v529, %v530
        %v532 = vand.u32 2147483647, %v528
        %v533 = vsub.f32 0.0, %v532
        %v534 = vmul.f32 %v533, 1.442695
        %v535 = vpow.pop %v534
        %v536 = vadd.f32 %v535, 1.0
        %v537 = vlog2.pop %v536
        %v538 = vmul.f32 %v537, 0.6931472
        %v539 = vmul.f32 -0.5, %v535
        %v540 = vadd.f32 %v539, 1.0
        %v541 = vmul.f32 %v540, %v535
        %v542 = vand.u32 2147483647, %v535
        %vm543 = vcmp.lt.f32.partialorder %v542, 0.0004427343
        %v544 = vsel %vm543, %v541, %v538
        %v545 = vadd.f32 %v531, %v544
        %v546 = vsel %vm526, %v545, 0.0
        %547 = vadd.xlane.f32.xlu0 %v546
        %v548 = vpop.xlane.xlu0 %547
        %v549 = vrot.slane %v548, 4
        %v550 = vadd.f32 %v548, %v549
        %v551 = vrot.slane %v550, 2
        %v552 = vadd.f32 %v550, %v551
        %v553 = vrot.slane %v552, 1
        %v554 = vadd.f32 %v552, %v553
        %v555 = vadd.f32 %v554, 0.0
        %v556 = vsel %vm526, 1, 0
        %v557 = vcvt.s32.f32 %v556
        %558 = vadd.xlane.f32.xlu0 %v557
        %v559 = vpop.xlane.xlu0 %558
        %v560 = vrot.slane %v559, 4
        %v561 = vadd.f32 %v559, %v560
        %v562 = vrot.slane %v561, 2
        %v563 = vadd.f32 %v561, %v562
        %v564 = vrot.slane %v563, 1
        %v565 = vadd.f32 %v563, %v564
        %v566 = vadd.f32 %v565, 0.0
        %vm567 = vcmp.eq.s32.totalorder %v293, 0
        %v568 = vsel %vm567, %v555, 0.0
        %vm569 = vcmp.eq.s32.totalorder %v293, 1
        %v570 = vsel %vm569, %v566, 0.0
        %v571 = vadd.f32 %v568, %v570
        %572 = vst [vmem:[%s278] sm:$0x1] %v571
        %s573 = sand.u32 %s152, 1
        %s574 = scalar_lea.sflag [#allocation3], %s573
        %s575 = sand.u32 %s152, 1
        %s576 = smul.addr %s575, 8
        %s577 = scalar_lea.vmem [#allocation2], %s576
        %s578 = sand.u32 %s178, 1
        %s579 = scalar_lea.sflag [#allocation5], %s578
        %s580 = sand.u32 %s178, 1
        %s581 = scalar_lea.vmem [#allocation4], %s580
        // Predicated region
        $region41: #{tpu_custom_call.1} parent=39 // pred_check
          %p582 = pneg %p162
        $region42: #{tpu_custom_call.1} parent=39 // pred_check_branch
          %584 = sbr.rel (%p582) target = $region44
        $region43: #{tpu_custom_call.1} parent=39 // pred_region
          %s586 = ssub.s32 128, 128
          %587 = vsyncadd %s574, %s586
          %s588 = smul.addr %s24, 128
          %s589 = scalar_lea.hbm %s5, %s588
          %s591 = sshll.u32 %s577, 4
          %s592 = int_to_ptr.vmem [resolvable:$true] %s591
          %594 = dma.vmem_to_hbm [thread:$0]  %s592, 128, %s589, %s574
        $region44: #{tpu_custom_call.1} parent=39 // pred_fallthru
          _
        // Predicated region
        $region45: #{tpu_custom_call.1} parent=39 // pred_check
          %p595 = pneg %p188
        $region46: #{tpu_custom_call.1} parent=39 // pred_check_branch
          %597 = sbr.rel (%p595) target = $region48
        $region47: #{tpu_custom_call.1} parent=39 // pred_region
          %s599 = ssub.s32 16, 16
          %600 = vsyncadd %s579, %s599
          %s601 = smul.addr %s24, 16
          %s602 = scalar_lea.hbm %s6, %s601
          %s604 = sshll.u32 %s581, 4
          %s605 = int_to_ptr.vmem [resolvable:$true] %s604
          %607 = dma.vmem_to_hbm [thread:$0]  %s605, 16, %s602, %s579
        $region48: #{tpu_custom_call.1} parent=39 // pred_fallthru
          _
      $region40: #{tpu_custom_call.1} parent=5 // pred_fallthru
        _
      %p608 = scmp.le.s32.totalorder 2, %s19
      // Predicated region
      $region49: #{tpu_custom_call.1} parent=5 // pred_check
        %p609 = pneg %p608
      $region50: #{tpu_custom_call.1} parent=5 // pred_check_branch
        %611 = sbr.rel (%p609) target = $region52
      $region51: #{tpu_custom_call.1} parent=5 // pred_region
        %s612 = ssub.s32 %s19, 2
        // Predicated region
        $region53: #{tpu_custom_call.1} parent=51 // pred_check
          %p613 = pneg %p168
        $region54: #{tpu_custom_call.1} parent=51 // pred_check_branch
          %615 = sbr.rel (%p613) target = $region56
        $region55: #{tpu_custom_call.1} parent=51 // pred_region
          %s616 = sand.u32 %s153, 1
          %s617 = scalar_lea.sflag [#allocation3], %s616
          %s618 = sand.u32 %s153, 1
          %s619 = smul.addr %s618, 8
          %s620 = scalar_lea.vmem [#allocation2], %s619
          %621 = dma.done %s617, 128
        $region56: #{tpu_custom_call.1} parent=51 // pred_fallthru
          _
        // Predicated region
        $region57: #{tpu_custom_call.1} parent=51 // pred_check
          %p622 = pneg %p194
        $region58: #{tpu_custom_call.1} parent=51 // pred_check_branch
          %624 = sbr.rel (%p622) target = $region60
        $region59: #{tpu_custom_call.1} parent=51 // pred_region
          %s625 = sand.u32 %s179, 1
          %s626 = scalar_lea.sflag [#allocation5], %s625
          %s627 = sand.u32 %s179, 1
          %s628 = scalar_lea.vmem [#allocation4], %s627
          %629 = dma.done %s626, 16
        $region60: #{tpu_custom_call.1} parent=51 // pred_fallthru
          _
      $region52: #{tpu_custom_call.1} parent=5 // pred_fallthru
        _
    $region6: #{tpu_custom_call.1} parent=1 // loop_footer
      %s23 = sadd.s32 1, %s19
    $region7: #{tpu_custom_call.1} parent=1 // loop_footer_branch
      %18 = sbr.rel target = $region3
    $region8: #{tpu_custom_call.1} parent=1 // loop_exit
      _
    %630 = vsyncpa [#allocation3], 1
    %s631 = scalar_lea.sflag [#allocation3], 1
    %632 = vsyncpa %s631, 1
    %633 = vsyncpa [#allocation5], 1
    %s634 = scalar_lea.sflag [#allocation5], 1
    %635 = vsyncpa %s634, 1

</llo_original>
